<compile_context>
chip_gen: v7x
topology: tpu7x:2x2x1
jax: 0.10.0
libtpu: 0.0.40
codegen_flags: <defaults>
</compile_context>

<pallas_src>
import jax
import jax.numpy as jnp
from jax.experimental import pallas as pl
from jax.experimental.pallas import tpu as pltpu

_LANE = 128          # vreg lane width; hidden/output dims zero-padded to this
_DEFAULT_TB = 2048   # batch tile (multiple of 8); amortizes per-step overhead


def _round_up(x, m):
    return ((x + m - 1) // m) * m


def _mlp_kernel(x_ref, w1_ref, w2_ref, w3_ref, w4_ref, o_ref):
    # Fused chain of MXU matmuls (f32 accumulation) with VPU ReLUs.
    # x is cast to the weight compute dtype in-kernel (no extra HBM pass);
    # activations are cast back to the narrow dtype between matmuls so the
    # MXU keeps taking narrow inputs on the bf16 path.
    cd = w1_ref.dtype
    h = jnp.dot(x_ref[...].astype(cd), w1_ref[...],
                preferred_element_type=jnp.float32)
    h = jnp.maximum(h, 0.0).astype(cd)
    h = jnp.dot(h, w2_ref[...], preferred_element_type=jnp.float32)
    h = jnp.maximum(h, 0.0).astype(cd)
    h = jnp.dot(h, w3_ref[...], preferred_element_type=jnp.float32)
    h = jnp.maximum(h, 0.0).astype(cd)
    out = jnp.dot(h, w4_ref[...], preferred_element_type=jnp.float32)
    o_ref[...] = out.astype(o_ref.dtype)


def prepare_params(params, compute_dtype=jnp.bfloat16):
    """One-time weight prep (do this OUTSIDE the per-step forward).

    PyTorch nn.Linear weights are (out_features, in_features).  We transpose
    to (in, out) so the kernel computes x @ W, zero-pad every out dim (and the
    matching in dim of the next layer) to 128 lanes, and cast to compute_dtype.
    Zero padding is exact: padded weight columns feed padded activation lanes
    that hit zero weight rows in the next layer; ReLU(0) = 0.
    """
    def pad_to(w, rows, cols):
        r, c = w.shape
        return jnp.pad(w, ((0, rows - r), (0, cols - c)))

    w1 = pad_to(params["w1"].T, params["w1"].shape[1], _LANE)  # (in, 128)
    w2 = pad_to(params["w2"].T, _LANE, _LANE)                  # (128, 128)
    w3 = pad_to(params["w3"].T, _LANE, _LANE)                  # (128, 128)
    w4 = pad_to(params["w4"].T, _LANE, _LANE)                  # (128, 128)
    return tuple(w.astype(compute_dtype) for w in (w1, w2, w3, w4))


def fashion_mnist_ffnn_forward(x, prepared_ws, output_size, tb=None):
    """Forward pass matching FashionMNIST_FFNN.forward.

    x: (B, input_size) or (B, 1, H, W) with H*W == input_size.  x is consumed
    in its native dtype (pass bf16 if the producer can emit it to halve the
    dominant HBM read stream); the in-kernel cast handles the rest.
    Returns (B, output_size) in the weights' compute dtype.
    """
    if x.ndim == 4:
        # squeeze(1).flatten(start_dim=-2)  (NCHW with C == 1)
        x = x[:, 0, :, :].reshape(x.shape[0], -1)

    w1, w2, w3, w4 = prepared_ws
    out_dtype = w1.dtype

    B, in_size = x.shape
    assert w1.shape[0] == in_size

    if tb is None:
        tb = _DEFAULT_TB
    tb = min(tb, _round_up(B, 8))       # multiple of 8 sublanes, no overshoot

    grid = (pl.cdiv(B, tb),)            # partial last block clamped by Pallas

    x_bytes = B * in_size * jnp.dtype(x.dtype).itemsize
    out_bytes = B * _LANE * jnp.dtype(out_dtype).itemsize
    w_bytes = sum(int(w.size) * jnp.dtype(w.dtype).itemsize
                  for w in (w1, w2, w3, w4))
    flops = 2 * B * (in_size * _LANE + 3 * _LANE * _LANE)

    out = pl.pallas_call(
        _mlp_kernel,
        out_shape=jax.ShapeDtypeStruct((B, _LANE), out_dtype),
        grid=grid,
        in_specs=[
            pl.BlockSpec((tb, in_size), lambda i: (i, 0)),      # stream x
            pl.BlockSpec(w1.shape, lambda i: (0, 0)),           # resident
            pl.BlockSpec(w2.shape, lambda i: (0, 0)),           # resident
            pl.BlockSpec(w3.shape, lambda i: (0, 0)),           # resident
            pl.BlockSpec(w4.shape, lambda i: (0, 0)),           # resident
        ],
        out_specs=pl.BlockSpec((tb, _LANE), lambda i: (i, 0)),  # lane-dense
        compiler_params=pltpu.CompilerParams(
            dimension_semantics=("parallel",),
            vmem_limit_bytes=32 * 1024 * 1024,
        ),
        cost_estimate=pl.CostEstimate(
            flops=flops,
            transcendentals=0,
            bytes_accessed=x_bytes + out_bytes + w_bytes,
        ),
    )(x, w1, w2, w3, w4)

    # Rows are independent; clamped/garbage rows of a partial last block never
    # escape because we only slice the first B rows (and there is no
    # cross-batch reduction in the kernel).
    return out[:, :output_size]


def init_params(key, input_size, output_size):
    """Deterministic init mimicking PyTorch nn.Linear default U(+-1/sqrt(fan_in))."""
    dims = [(64, input_size), (32, 64), (16, 32), (output_size, 16)]
    params = {}
    for i, (out_f, in_f) in enumerate(dims, start=1):
        key, sub = jax.random.split(key)
        bound = 1.0 / jnp.sqrt(jnp.float32(in_f))
        params[f"w{i}"] = jax.random.uniform(
            sub, (out_f, in_f), dtype=jnp.float32, minval=-bound, maxval=bound
        )
    return params


def _reference_forward(x, params):
    if x.ndim == 4:
        x = x[:, 0, :, :].reshape(x.shape[0], -1)
    h = jnp.maximum(x @ params["w1"].T, 0.0)
    h = jnp.maximum(h @ params["w2"].T, 0.0)
    h = jnp.maximum(h @ params["w3"].T, 0.0)
    return h @ params["w4"].T


# TODO(synk): scale_network() is a host-side, training-time weight rescaling
# utility, not part of the forward pass; apply it to `params` before
# prepare_params() if needed.

if __name__ == "__main__":
    key = jax.random.PRNGKey(0)
    k_x, k_p = jax.random.split(key)

    # Small shapes consistent with the forward: NCHW input with C=1,
    # input_size = H*W = 16*16 = 256, output_size = 10.
    B, H, W = 2, 16, 16
    input_size = H * W
    output_size = 10

    x = jax.random.normal(k_x, (B, 1, H, W), dtype=jnp.float32)
    params = init_params(k_p, input_size, output_size)
    ref = _reference_forward(x, params)

    # f32 path: exact-precision correctness check (f32 output).
    ws_f32 = prepare_params(params, compute_dtype=jnp.float32)
    out_f32 = jax.block_until_ready(
        fashion_mnist_ffnn_forward(x, ws_f32, output_size)
    )
    assert out_f32.shape == (B, output_size)
    assert jnp.allclose(out_f32, ref, atol=1e-4, rtol=1e-4)

    # bf16 path (default / fast): bf16 weights + in-kernel x cast + bf16
    # output store; MXU accumulation stays f32.  ~3 decimal digits precision.
    ws_bf16 = prepare_params(params, compute_dtype=jnp.bfloat16)
    out_bf16 = jax.block_until_ready(
        fashion_mnist_ffnn_forward(x, ws_bf16, output_size)
    )
    assert out_bf16.shape == (B, output_size)
    assert jnp.allclose(out_bf16.astype(jnp.float32), ref, atol=5e-2, rtol=5e-2)

    print("KERNEL_OK")
</pallas_src>

<mosaic_0001>
module attributes {stable_mosaic.version = 11 : i64} {
  func.func @_mlp_kernel(%arg0: i32, %arg1: memref<8x256xf32, #tpu.memory_space<vmem>>, %arg2: memref<256x128xf32, #tpu.memory_space<vmem>>, %arg3: memref<128x128xf32, #tpu.memory_space<vmem>>, %arg4: memref<128x128xf32, #tpu.memory_space<vmem>>, %arg5: memref<128x128xf32, #tpu.memory_space<vmem>>, %arg6: memref<8x128xf32, #tpu.memory_space<vmem>>) attributes {dimension_semantics = [#tpu.dimension_semantics<parallel>], iteration_bounds = array<i64: 1>, scalar_prefetch = 0 : i64, scratch_operands = 0 : i64, tpu.core_type = #tpu.core_type<tc>, window_params = [{transform_indices = @transform_0, window_bounds = array<i64: 8, 256>}, {pipeline_mode = #tpu.pipeline_mode<synchronous>, transform_indices = @transform_1, window_bounds = array<i64: 256, 128>}, {pipeline_mode = #tpu.pipeline_mode<synchronous>, transform_indices = @transform_2, window_bounds = array<i64: 128, 128>}, {pipeline_mode = #tpu.pipeline_mode<synchronous>, transform_indices = @transform_3, window_bounds = array<i64: 128, 128>}, {pipeline_mode = #tpu.pipeline_mode<synchronous>, transform_indices = @transform_4, window_bounds = array<i64: 128, 128>}, {transform_indices = @transform_5, window_bounds = array<i64: 8, 128>}]} {
    %c0 = arith.constant 0 : index
    %c0_0 = arith.constant 0 : index
    %0 = vector.load %arg1[%c0, %c0_0] : memref<8x256xf32, #tpu.memory_space<vmem>>, vector<8x256xf32>
    %c0_1 = arith.constant 0 : index
    %c0_2 = arith.constant 0 : index
    %1 = vector.load %arg2[%c0_1, %c0_2] : memref<256x128xf32, #tpu.memory_space<vmem>>, vector<256x128xf32>
    %cst = arith.constant dense<0.000000e+00> : vector<8x128xf32>
    %2 = tpu.matmul %0, %1, %cst {dimension_numbers = #tpu.dot_dimension_numbers<[1], [0], [0], [1], [0, 0, 1, 1], [], []>} : vector<8x256xf32>, vector<256x128xf32>, vector<8x128xf32> -> vector<8x128xf32>
    %cst_3 = arith.constant 0.000000e+00 : f32
    %3 = vector.broadcast %cst_3 : f32 to vector<8x128xf32>
    %4 = arith.maximumf %2, %3 : vector<8x128xf32>
    %c0_4 = arith.constant 0 : index
    %c0_5 = arith.constant 0 : index
    %5 = vector.load %arg3[%c0_4, %c0_5] : memref<128x128xf32, #tpu.memory_space<vmem>>, vector<128x128xf32>
    %cst_6 = arith.constant dense<0.000000e+00> : vector<8x128xf32>
    %6 = tpu.matmul %4, %5, %cst_6 {dimension_numbers = #tpu.dot_dimension_numbers<[1], [0], [0], [1], [0, 0, 1, 1], [], []>} : vector<8x128xf32>, vector<128x128xf32>, vector<8x128xf32> -> vector<8x128xf32>
    %cst_7 = arith.constant 0.000000e+00 : f32
    %7 = vector.broadcast %cst_7 : f32 to vector<8x128xf32>
    %8 = arith.maximumf %6, %7 : vector<8x128xf32>
    %c0_8 = arith.constant 0 : index
    %c0_9 = arith.constant 0 : index
    %9 = vector.load %arg4[%c0_8, %c0_9] : memref<128x128xf32, #tpu.memory_space<vmem>>, vector<128x128xf32>
    %cst_10 = arith.constant dense<0.000000e+00> : vector<8x128xf32>
    %10 = tpu.matmul %8, %9, %cst_10 {dimension_numbers = #tpu.dot_dimension_numbers<[1], [0], [0], [1], [0, 0, 1, 1], [], []>} : vector<8x128xf32>, vector<128x128xf32>, vector<8x128xf32> -> vector<8x128xf32>
    %cst_11 = arith.constant 0.000000e+00 : f32
    %11 = vector.broadcast %cst_11 : f32 to vector<8x128xf32>
    %12 = arith.maximumf %10, %11 : vector<8x128xf32>
    %c0_12 = arith.constant 0 : index
    %c0_13 = arith.constant 0 : index
    %13 = vector.load %arg5[%c0_12, %c0_13] : memref<128x128xf32, #tpu.memory_space<vmem>>, vector<128x128xf32>
    %cst_14 = arith.constant dense<0.000000e+00> : vector<8x128xf32>
    %14 = tpu.matmul %12, %13, %cst_14 {dimension_numbers = #tpu.dot_dimension_numbers<[1], [0], [0], [1], [0, 0, 1, 1], [], []>} : vector<8x128xf32>, vector<128x128xf32>, vector<8x128xf32> -> vector<8x128xf32>
    %c0_15 = arith.constant 0 : index
    %c0_16 = arith.constant 0 : index
    %15 = vector.load %arg6[%c0_15, %c0_16] : memref<8x128xf32, #tpu.memory_space<vmem>>, vector<8x128xf32>
    tpu.vector_store %arg6[%c0_15, %c0_16], %14 {strides = array<i32>} : memref<8x128xf32, #tpu.memory_space<vmem>>, vector<8x128xf32>,
    return
  }
  func.func @transform_0(%arg0: i32) -> (i32, i32) {
    %c0_i32 = arith.constant 0 : i32
    %c0_i32_0 = arith.constant 0 : i32
    return %arg0, %c0_i32 : i32, i32
  }
  func.func @transform_1(%arg0: i32) -> (i32, i32) {
    %c0_i32 = arith.constant 0 : i32
    %c0_i32_0 = arith.constant 0 : i32
    %c0_i32_1 = arith.constant 0 : i32
    return %c0_i32, %c0_i32_0 : i32, i32
  }
  func.func @transform_2(%arg0: i32) -> (i32, i32) {
    %c0_i32 = arith.constant 0 : i32
    %c0_i32_0 = arith.constant 0 : i32
    %c0_i32_1 = arith.constant 0 : i32
    return %c0_i32, %c0_i32_0 : i32, i32
  }
  func.func @transform_3(%arg0: i32) -> (i32, i32) {
    %c0_i32 = arith.constant 0 : i32
    %c0_i32_0 = arith.constant 0 : i32
    %c0_i32_1 = arith.constant 0 : i32
    return %c0_i32, %c0_i32_0 : i32, i32
  }
  func.func @transform_4(%arg0: i32) -> (i32, i32) {
    %c0_i32 = arith.constant 0 : i32
    %c0_i32_0 = arith.constant 0 : i32
    %c0_i32_1 = arith.constant 0 : i32
    return %c0_i32, %c0_i32_0 : i32, i32
  }
  func.func @transform_5(%arg0: i32) -> (i32, i32) {
    %c0_i32 = arith.constant 0 : i32
    %c0_i32_0 = arith.constant 0 : i32
    return %arg0, %c0_i32 : i32, i32
  }
}

</mosaic_0001>

<llo_original>
// kernel: tpu_custom_call.1
$region0: #{tpu_custom_call.1}
  #allocation0 [shape = 'u32[]', space=smem, size = 0x4, offset = 0x4, fixed_abs, tag = 'smem constant byte address 0x4 - core index']
  #allocation1 [shape = 'u32[144,128]{1,0:T(1,128)}', space=vmem, size = 0x12000, scoped, tag = 'internal scratch']
  %s0 = inlined_call_operand.hbm [shape: f32[2,256], index: 0, kind: input, shape index: {}]
  %s1 = inlined_call_operand.hbm [shape: f32[256,128], index: 1, kind: input, shape index: {}]
  %s2 = inlined_call_operand.hbm [shape: f32[128,128], index: 2, kind: input, shape index: {}]
  %s3 = inlined_call_operand.hbm [shape: f32[128,128], index: 3, kind: input, shape index: {}]
  %s4 = inlined_call_operand.hbm [shape: f32[128,128], index: 4, kind: input, shape index: {}]
  %s5 = inlined_call_operand.hbm [shape: f32[2,128], index: 5, kind: output, shape index: {}]
  %s6 = sld [smem:[#allocation0]]
  $region50: #{tpu_custom_call.1} parent=0
    _
  %s8 = ssub.s32 1, %s6
  %s9 = scalar_select 0, %s8, %s6
  $region1: #{tpu_custom_call.1} parent=0
    #allocation2 [shape = 'u8[8192]{0}', space=vmem, size = 0x2000, scoped, tag = 'input window, operand 0, single buffered']
    #allocation3 [shape = 's32[1]{0}', space=sflag, size = 0x4, scoped, tag = 'scoped memory for tpu_custom_call.1']
    #allocation4 [shape = 's32[1]{0}', space=sflag, size = 0x4, scoped, tag = 'scoped memory for tpu_custom_call.1']
    #allocation5 [shape = 'u8[131072]{0}', space=vmem, size = 0x20000, scoped, tag = 'input window, operand 1, single buffered']
    #allocation6 [shape = 's32[1]{0}', space=sflag, size = 0x4, scoped, tag = 'scoped memory for tpu_custom_call.1']
    #allocation7 [shape = 'u8[65536]{0}', space=vmem, size = 0x10000, scoped, tag = 'input window, operand 2, single buffered']
    #allocation8 [shape = 'u8[65536]{0}', space=vmem, size = 0x10000, scoped, tag = 'input window, operand 3, single buffered']
    #allocation9 [shape = 's32[1]{0}', space=sflag, size = 0x4, scoped, tag = 'scoped memory for tpu_custom_call.1']
    #allocation10 [shape = 'u8[65536]{0}', space=vmem, size = 0x10000, scoped, tag = 'input window, operand 4, single buffered']
    #allocation11 [shape = 'u8[4096]{0}', space=vmem, size = 0x1000, scoped, tag = 'output window, operand 0, single buffered']
    %10 = vsyncpa [#allocation3], 0
    %11 = vsyncpa [#allocation6], 0
    %12 = vsyncpa [#allocation9], 0
    %13 = vsyncpa [#allocation4], 0
    // Predicated region
    $region2: #{tpu_custom_call.1} parent=1 // pred_check
      _
    $region3: #{tpu_custom_call.1} parent=1 // pred_check_branch
      %15 = sbr.rel (0) target = $region5
    $region4: #{tpu_custom_call.1} parent=1 // pred_region
      %s17 = ssub.s32 256, 64
      %18 = vsyncadd [#allocation3], %s17
      %s19 = sshll.u32 [#allocation2], 4
      %s20 = int_to_ptr.vmem [resolvable:$true] %s19
      %25 = dma.hbm_to_vmem [thread:$0]  %s0, 64, %s20, [#allocation3], 64, 64, 4
    $region5: #{tpu_custom_call.1} parent=1 // pred_fallthru
      _
    // Predicated region
    $region6: #{tpu_custom_call.1} parent=1 // pred_check
      _
    $region7: #{tpu_custom_call.1} parent=1 // pred_check_branch
      %27 = sbr.rel (0) target = $region9
    $region8: #{tpu_custom_call.1} parent=1 // pred_region
      %s29 = ssub.s32 4096, 4096
      %30 = vsyncadd [#allocation6], %s29
      %s31 = sshll.u32 [#allocation5], 4
      %s32 = int_to_ptr.vmem [resolvable:$true] %s31
      %37 = dma.hbm_to_vmem [thread:$0]  %s1, 4096, %s32, [#allocation6], 128, 128, 8
    $region9: #{tpu_custom_call.1} parent=1 // pred_fallthru
      _
    // Predicated region
    $region10: #{tpu_custom_call.1} parent=1 // pred_check
      _
    $region11: #{tpu_custom_call.1} parent=1 // pred_check_branch
      %39 = sbr.rel (0) target = $region13
    $region12: #{tpu_custom_call.1} parent=1 // pred_region
      %s41 = ssub.s32 2048, 2048
      %42 = vsyncadd [#allocation6], %s41
      %s43 = sshll.u32 [#allocation7], 4
      %s44 = int_to_ptr.vmem [resolvable:$true] %s43
      %49 = dma.hbm_to_vmem [thread:$0]  %s2, 2048, %s44, [#allocation6], 128, 128, 8
    $region13: #{tpu_custom_call.1} parent=1 // pred_fallthru
      _
    // Predicated region
    $region14: #{tpu_custom_call.1} parent=1 // pred_check
      _
    $region15: #{tpu_custom_call.1} parent=1 // pred_check_branch
      %51 = sbr.rel (0) target = $region17
    $region16: #{tpu_custom_call.1} parent=1 // pred_region
      %s53 = ssub.s32 2048, 2048
      %54 = vsyncadd [#allocation9], %s53
      %s55 = sshll.u32 [#allocation8], 4
      %s56 = int_to_ptr.vmem [resolvable:$true] %s55
      %61 = dma.hbm_to_vmem [thread:$0]  %s3, 2048, %s56, [#allocation9], 128, 128, 8
    $region17: #{tpu_custom_call.1} parent=1 // pred_fallthru
      _
    // Predicated region
    $region18: #{tpu_custom_call.1} parent=1 // pred_check
      _
    $region19: #{tpu_custom_call.1} parent=1 // pred_check_branch
      %63 = sbr.rel (0) target = $region21
    $region20: #{tpu_custom_call.1} parent=1 // pred_region
      %s65 = ssub.s32 2048, 2048
      %66 = vsyncadd [#allocation9], %s65
      %s67 = sshll.u32 [#allocation10], 4
      %s68 = int_to_ptr.vmem [resolvable:$true] %s67
      %73 = dma.hbm_to_vmem [thread:$0]  %s4, 2048, %s68, [#allocation9], 128, 128, 8
    $region21: #{tpu_custom_call.1} parent=1 // pred_fallthru
      _
    // Predicated region
    $region22: #{tpu_custom_call.1} parent=1 // pred_check
      _
    $region23: #{tpu_custom_call.1} parent=1 // pred_check_branch
      %75 = sbr.rel (0) target = $region25
    $region24: #{tpu_custom_call.1} parent=1 // pred_region
      %76 = dma.done [#allocation3], 256
    $region25: #{tpu_custom_call.1} parent=1 // pred_fallthru
      _
    // Predicated region
    $region26: #{tpu_custom_call.1} parent=1 // pred_check
      _
    $region27: #{tpu_custom_call.1} parent=1 // pred_check_branch
      %78 = sbr.rel (0) target = $region29
    $region28: #{tpu_custom_call.1} parent=1 // pred_region
      %79 = dma.done [#allocation6], 4096
    $region29: #{tpu_custom_call.1} parent=1 // pred_fallthru
      _
    // Predicated region
    $region30: #{tpu_custom_call.1} parent=1 // pred_check
      _
    $region31: #{tpu_custom_call.1} parent=1 // pred_check_branch
      %81 = sbr.rel (0) target = $region33
    $region32: #{tpu_custom_call.1} parent=1 // pred_region
      %82 = dma.done [#allocation6], 2048
    $region33: #{tpu_custom_call.1} parent=1 // pred_fallthru
      _
    // Predicated region
    $region34: #{tpu_custom_call.1} parent=1 // pred_check
      _
    $region35: #{tpu_custom_call.1} parent=1 // pred_check_branch
      %84 = sbr.rel (0) target = $region37
    $region36: #{tpu_custom_call.1} parent=1 // pred_region
      %85 = dma.done [#allocation9], 2048
    $region37: #{tpu_custom_call.1} parent=1 // pred_fallthru
      _
    // Predicated region
    $region38: #{tpu_custom_call.1} parent=1 // pred_check
      _
    $region39: #{tpu_custom_call.1} parent=1 // pred_check_branch
      %87 = sbr.rel (0) target = $region41
    $region40: #{tpu_custom_call.1} parent=1 // pred_region
      %88 = dma.done [#allocation9], 2048
    $region41: #{tpu_custom_call.1} parent=1 // pred_fallthru
      _
    %v89 = vld [vmem:[#allocation2] sm:$0xf]
    %v90 = vld [vmem:[#allocation2 + $0x4] sm:$0xf]
    %v91 = vld [vmem:[#allocation2 + $0x8] sm:$0xf]
    %v92 = vld [vmem:[#allocation2 + $0xc] sm:$0xf]
    %v93 = vld [vmem:[#allocation5] sm:$0xff]
    %v94 = vld [vmem:[#allocation5 + $0x8] sm:$0xff]
    %v95 = vld [vmem:[#allocation5 + $0x10] sm:$0xff]
    %v96 = vld [vmem:[#allocation5 + $0x18] sm:$0xff]
    %v97 = vld [vmem:[#allocation5 + $0x20] sm:$0xff]
    %v98 = vld [vmem:[#allocation5 + $0x28] sm:$0xff]
    %v99 = vld [vmem:[#allocation5 + $0x30] sm:$0xff]
    %v100 = vld [vmem:[#allocation5 + $0x38] sm:$0xff]
    %v101 = vld [vmem:[#allocation5 + $0x40] sm:$0xff]
    %v102 = vld [vmem:[#allocation5 + $0x48] sm:$0xff]
    %v103 = vld [vmem:[#allocation5 + $0x50] sm:$0xff]
    %v104 = vld [vmem:[#allocation5 + $0x58] sm:$0xff]
    %v105 = vld [vmem:[#allocation5 + $0x60] sm:$0xff]
    %v106 = vld [vmem:[#allocation5 + $0x68] sm:$0xff]
    %v107 = vld [vmem:[#allocation5 + $0x70] sm:$0xff]
    %v108 = vld [vmem:[#allocation5 + $0x78] sm:$0xff]
    %v109 = vld [vmem:[#allocation5 + $0x80] sm:$0xff]
    %v110 = vld [vmem:[#allocation5 + $0x88] sm:$0xff]
    %v111 = vld [vmem:[#allocation5 + $0x90] sm:$0xff]
    %v112 = vld [vmem:[#allocation5 + $0x98] sm:$0xff]
    %v113 = vld [vmem:[#allocation5 + $0xa0] sm:$0xff]
    %v114 = vld [vmem:[#allocation5 + $0xa8] sm:$0xff]
    %v115 = vld [vmem:[#allocation5 + $0xb0] sm:$0xff]
    %v116 = vld [vmem:[#allocation5 + $0xb8] sm:$0xff]
    %v117 = vld [vmem:[#allocation5 + $0xc0] sm:$0xff]
    %v118 = vld [vmem:[#allocation5 + $0xc8] sm:$0xff]
    %v119 = vld [vmem:[#allocation5 + $0xd0] sm:$0xff]
    %v120 = vld [vmem:[#allocation5 + $0xd8] sm:$0xff]
    %v121 = vld [vmem:[#allocation5 + $0xe0] sm:$0xff]
    %v122 = vld [vmem:[#allocation5 + $0xe8] sm:$0xff]
    %v123 = vld [vmem:[#allocation5 + $0xf0] sm:$0xff]
    %v124 = vld [vmem:[#allocation5 + $0xf8] sm:$0xff]
    %v129 = vcombine.low %v89, %v90
    %v130 = vcombine.low %v91, %v92
    %v132 = vunpack.c.l.s4 1983009808
    %v133 = vunpack.c.0.s8 %v132
    %v134 = vlaneseq
    %v135 = vshrl.u32 %v134, 7
    %v136 = vsub.s32 %v133, %v135
    %v137 = vrot.slane %v129, %v136
    %v139 = vunpack.c.l.s4 1983009808
    %v140 = vunpack.c.0.s8 %v139
    %v141 = vlaneseq
    %v142 = vshrl.u32 %v141, 7
    %v143 = vsub.s32 %v140, %v142
    %v144 = vrot.slane %v130, %v143
    %v145 = vcombine.low %v137, %v144
    %v146 = vcombine.high %v137, %v144
    %149 = vmatprep.subr.mxu0 0.0
    %150 = vmatpush1.msra.mxu0 %v93
    %151 = vmatprep.subr.mxu0 0.0
    %152 = vmatpush1.msra.mxu0 %v94
    %153 = vmatprep.subr.mxu0 0.0
    %154 = vmatpush1.msra.mxu0 %v95
    %155 = vmatprep.subr.mxu0 0.0
    %156 = vmatpush1.msra.mxu0 %v96
    %157 = vmatprep.subr.mxu0 0.0
    %158 = vmatpush1.msra.mxu0 %v97
    %159 = vmatprep.subr.mxu0 0.0
    %160 = vmatpush1.msra.mxu0 %v98
    %161 = vmatprep.subr.mxu0 0.0
    %162 = vmatpush1.msra.mxu0 %v99
    %163 = vmatprep.subr.mxu0 0.0
    %164 = vmatpush1.msra.mxu0 %v100
    %165 = vmatprep.subr.mxu0 0.0
    %166 = vmatpush1.msra.mxu0 %v101
    %167 = vmatprep.subr.mxu0 0.0
    %168 = vmatpush1.msra.mxu0 %v102
    %169 = vmatprep.subr.mxu0 0.0
    %170 = vmatpush1.msra.mxu0 %v103
    %171 = vmatprep.subr.mxu0 0.0
    %172 = vmatpush1.msra.mxu0 %v104
    %173 = vmatprep.subr.mxu0 0.0
    %174 = vmatpush1.msra.mxu0 %v105
    %175 = vmatprep.subr.mxu0 0.0
    %176 = vmatpush1.msra.mxu0 %v106
    %177 = vmatprep.subr.mxu0 0.0
    %178 = vmatpush1.msra.mxu0 %v107
    %179 = vmatprep.subr.mxu0 0.0
    %180 = vmatpush1.msra.mxu0 %v108
    %181 = vmatprep.subr.mxu0 0.0
    %182 = vmatpush1.msra.mxu0 %v109
    %183 = vmatprep.subr.mxu0 0.0
    %184 = vmatpush1.msra.mxu0 %v110
    %185 = vmatprep.subr.mxu0 0.0
    %186 = vmatpush1.msra.mxu0 %v111
    %187 = vmatprep.subr.mxu0 0.0
    %188 = vmatpush1.msra.mxu0 %v112
    %189 = vmatprep.subr.mxu0 0.0
    %190 = vmatpush1.msra.mxu0 %v113
    %191 = vmatprep.subr.mxu0 0.0
    %192 = vmatpush1.msra.mxu0 %v114
    %193 = vmatprep.subr.mxu0 0.0
    %194 = vmatpush1.msra.mxu0 %v115
    %195 = vmatprep.subr.mxu0 0.0
    %196 = vmatpush1.msra.mxu0 %v116
    %197 = vmatprep.subr.mxu0 0.0
    %198 = vmatpush1.msra.mxu0 %v117
    %199 = vmatprep.subr.mxu0 0.0
    %200 = vmatpush1.msra.mxu0 %v118
    %201 = vmatprep.subr.mxu0 0.0
    %202 = vmatpush1.msra.mxu0 %v119
    %203 = vmatprep.subr.mxu0 0.0
    %204 = vmatpush1.msra.mxu0 %v120
    %205 = vmatprep.subr.mxu0 0.0
    %206 = vmatpush1.msra.mxu0 %v121
    %207 = vmatprep.subr.mxu0 0.0
    %208 = vmatpush1.msra.mxu0 %v122
    %209 = vmatprep.subr.mxu0 0.0
    %210 = vmatpush1.msra.mxu0 %v123
    %211 = vmatprep.subr.mxu0 0.0
    %212 = vmatpush1.msra.mxu0 %v124
    %213 = vmatprep.mubr.f32.mxu0 %v146
    %214 = vmatmul.mubr.f32.gmra.mrb[0].mxu0 %v145
    %v215 = vpop.f32.mrb[0].mxu0
    %v216 = vadd.f32 0.0, %v215
    %v217 = vpop.f32.mrb[0].mxu0
    %218 = vdwg.mxu0
    %v219 = vmax.f32 %v216, 0.0
    %v220 = vld [vmem:[#allocation7] sm:$0xff]
    %v221 = vld [vmem:[#allocation7 + $0x8] sm:$0xff]
    %v222 = vld [vmem:[#allocation7 + $0x10] sm:$0xff]
    %v223 = vld [vmem:[#allocation7 + $0x18] sm:$0xff]
    %v224 = vld [vmem:[#allocation7 + $0x20] sm:$0xff]
    %v225 = vld [vmem:[#allocation7 + $0x28] sm:$0xff]
    %v226 = vld [vmem:[#allocation7 + $0x30] sm:$0xff]
    %v227 = vld [vmem:[#allocation7 + $0x38] sm:$0xff]
    %v228 = vld [vmem:[#allocation7 + $0x40] sm:$0xff]
    %v229 = vld [vmem:[#allocation7 + $0x48] sm:$0xff]
    %v230 = vld [vmem:[#allocation7 + $0x50] sm:$0xff]
    %v231 = vld [vmem:[#allocation7 + $0x58] sm:$0xff]
    %v232 = vld [vmem:[#allocation7 + $0x60] sm:$0xff]
    %v233 = vld [vmem:[#allocation7 + $0x68] sm:$0xff]
    %v234 = vld [vmem:[#allocation7 + $0x70] sm:$0xff]
    %v235 = vld [vmem:[#allocation7 + $0x78] sm:$0xff]
    %236 = vmatprep.subr.mxu0 0.0
    %237 = vmatpush1.msra.mxu0 %v220
    %238 = vmatprep.subr.mxu0 0.0
    %239 = vmatpush1.msra.mxu0 %v221
    %240 = vmatprep.subr.mxu0 0.0
    %241 = vmatpush1.msra.mxu0 %v222
    %242 = vmatprep.subr.mxu0 0.0
    %243 = vmatpush1.msra.mxu0 %v223
    %244 = vmatprep.subr.mxu0 0.0
    %245 = vmatpush1.msra.mxu0 %v224
    %246 = vmatprep.subr.mxu0 0.0
    %247 = vmatpush1.msra.mxu0 %v225
    %248 = vmatprep.subr.mxu0 0.0
    %249 = vmatpush1.msra.mxu0 %v226
    %250 = vmatprep.subr.mxu0 0.0
    %251 = vmatpush1.msra.mxu0 %v227
    %252 = vmatprep.subr.mxu0 0.0
    %253 = vmatpush1.msra.mxu0 %v228
    %254 = vmatprep.subr.mxu0 0.0
    %255 = vmatpush1.msra.mxu0 %v229
    %256 = vmatprep.subr.mxu0 0.0
    %257 = vmatpush1.msra.mxu0 %v230
    %258 = vmatprep.subr.mxu0 0.0
    %259 = vmatpush1.msra.mxu0 %v231
    %260 = vmatprep.subr.mxu0 0.0
    %261 = vmatpush1.msra.mxu0 %v232
    %262 = vmatprep.subr.mxu0 0.0
    %263 = vmatpush1.msra.mxu0 %v233
    %264 = vmatprep.subr.mxu0 0.0
    %265 = vmatpush1.msra.mxu0 %v234
    %266 = vmatprep.subr.mxu0 0.0
    %267 = vmatpush1.msra.mxu0 %v235
    %268 = vmatprep.subr.mxu0 0.0
    %269 = vmatpush1.msra.mxu0 0.0
    %270 = vmatprep.subr.mxu0 0.0
    %271 = vmatpush1.msra.mxu0 0.0
    %272 = vmatprep.subr.mxu0 0.0
    %273 = vmatpush1.msra.mxu0 0.0
    %274 = vmatprep.subr.mxu0 0.0
    %275 = vmatpush1.msra.mxu0 0.0
    %276 = vmatprep.subr.mxu0 0.0
    %277 = vmatpush1.msra.mxu0 0.0
    %278 = vmatprep.subr.mxu0 0.0
    %279 = vmatpush1.msra.mxu0 0.0
    %280 = vmatprep.subr.mxu0 0.0
    %281 = vmatpush1.msra.mxu0 0.0
    %282 = vmatprep.subr.mxu0 0.0
    %283 = vmatpush1.msra.mxu0 0.0
    %284 = vmatprep.subr.mxu0 0.0
    %285 = vmatpush1.msra.mxu0 0.0
    %286 = vmatprep.subr.mxu0 0.0
    %287 = vmatpush1.msra.mxu0 0.0
    %288 = vmatprep.subr.mxu0 0.0
    %289 = vmatpush1.msra.mxu0 0.0
    %290 = vmatprep.subr.mxu0 0.0
    %291 = vmatpush1.msra.mxu0 0.0
    %292 = vmatprep.subr.mxu0 0.0
    %293 = vmatpush1.msra.mxu0 0.0
    %294 = vmatprep.subr.mxu0 0.0
    %295 = vmatpush1.msra.mxu0 0.0
    %296 = vmatprep.subr.mxu0 0.0
    %297 = vmatpush1.msra.mxu0 0.0
    %298 = vmatprep.subr.mxu0 0.0
    %299 = vmatpush1.msra.mxu0 0.0
    %300 = vmatprep.mubr.f32.mxu0 0.0
    %301 = vmatmul.mubr.f32.gmra.mrb[0].mxu0 %v219
    %v302 = vpop.f32.mrb[0].mxu0
    %v303 = vadd.f32 0.0, %v302
    %v304 = vpop.f32.mrb[0].mxu0
    %305 = vdwg.mxu0
    %v306 = vmax.f32 %v303, 0.0
    %v307 = vld [vmem:[#allocation8] sm:$0xff]
    %v308 = vld [vmem:[#allocation8 + $0x8] sm:$0xff]
    %v309 = vld [vmem:[#allocation8 + $0x10] sm:$0xff]
    %v310 = vld [vmem:[#allocation8 + $0x18] sm:$0xff]
    %v311 = vld [vmem:[#allocation8 + $0x20] sm:$0xff]
    %v312 = vld [vmem:[#allocation8 + $0x28] sm:$0xff]
    %v313 = vld [vmem:[#allocation8 + $0x30] sm:$0xff]
    %v314 = vld [vmem:[#allocation8 + $0x38] sm:$0xff]
    %v315 = vld [vmem:[#allocation8 + $0x40] sm:$0xff]
    %v316 = vld [vmem:[#allocation8 + $0x48] sm:$0xff]
    %v317 = vld [vmem:[#allocation8 + $0x50] sm:$0xff]
    %v318 = vld [vmem:[#allocation8 + $0x58] sm:$0xff]
    %v319 = vld [vmem:[#allocation8 + $0x60] sm:$0xff]
    %v320 = vld [vmem:[#allocation8 + $0x68] sm:$0xff]
    %v321 = vld [vmem:[#allocation8 + $0x70] sm:$0xff]
    %v322 = vld [vmem:[#allocation8 + $0x78] sm:$0xff]
    %323 = vmatprep.subr.mxu0 0.0
    %324 = vmatpush1.msra.mxu0 %v307
    %325 = vmatprep.subr.mxu0 0.0
    %326 = vmatpush1.msra.mxu0 %v308
    %327 = vmatprep.subr.mxu0 0.0
    %328 = vmatpush1.msra.mxu0 %v309
    %329 = vmatprep.subr.mxu0 0.0
    %330 = vmatpush1.msra.mxu0 %v310
    %331 = vmatprep.subr.mxu0 0.0
    %332 = vmatpush1.msra.mxu0 %v311
    %333 = vmatprep.subr.mxu0 0.0
    %334 = vmatpush1.msra.mxu0 %v312
    %335 = vmatprep.subr.mxu0 0.0
    %336 = vmatpush1.msra.mxu0 %v313
    %337 = vmatprep.subr.mxu0 0.0
    %338 = vmatpush1.msra.mxu0 %v314
    %339 = vmatprep.subr.mxu0 0.0
    %340 = vmatpush1.msra.mxu0 %v315
    %341 = vmatprep.subr.mxu0 0.0
    %342 = vmatpush1.msra.mxu0 %v316
    %343 = vmatprep.subr.mxu0 0.0
    %344 = vmatpush1.msra.mxu0 %v317
    %345 = vmatprep.subr.mxu0 0.0
    %346 = vmatpush1.msra.mxu0 %v318
    %347 = vmatprep.subr.mxu0 0.0
    %348 = vmatpush1.msra.mxu0 %v319
    %349 = vmatprep.subr.mxu0 0.0
    %350 = vmatpush1.msra.mxu0 %v320
    %351 = vmatprep.subr.mxu0 0.0
    %352 = vmatpush1.msra.mxu0 %v321
    %353 = vmatprep.subr.mxu0 0.0
    %354 = vmatpush1.msra.mxu0 %v322
    %355 = vmatprep.subr.mxu0 0.0
    %356 = vmatpush1.msra.mxu0 0.0
    %357 = vmatprep.subr.mxu0 0.0
    %358 = vmatpush1.msra.mxu0 0.0
    %359 = vmatprep.subr.mxu0 0.0
    %360 = vmatpush1.msra.mxu0 0.0
    %361 = vmatprep.subr.mxu0 0.0
    %362 = vmatpush1.msra.mxu0 0.0
    %363 = vmatprep.subr.mxu0 0.0
    %364 = vmatpush1.msra.mxu0 0.0
    %365 = vmatprep.subr.mxu0 0.0
    %366 = vmatpush1.msra.mxu0 0.0
    %367 = vmatprep.subr.mxu0 0.0
    %368 = vmatpush1.msra.mxu0 0.0
    %369 = vmatprep.subr.mxu0 0.0
    %370 = vmatpush1.msra.mxu0 0.0
    %371 = vmatprep.subr.mxu0 0.0
    %372 = vmatpush1.msra.mxu0 0.0
    %373 = vmatprep.subr.mxu0 0.0
    %374 = vmatpush1.msra.mxu0 0.0
    %375 = vmatprep.subr.mxu0 0.0
    %376 = vmatpush1.msra.mxu0 0.0
    %377 = vmatprep.subr.mxu0 0.0
    %378 = vmatpush1.msra.mxu0 0.0
    %379 = vmatprep.subr.mxu0 0.0
    %380 = vmatpush1.msra.mxu0 0.0
    %381 = vmatprep.subr.mxu0 0.0
    %382 = vmatpush1.msra.mxu0 0.0
    %383 = vmatprep.subr.mxu0 0.0
    %384 = vmatpush1.msra.mxu0 0.0
    %385 = vmatprep.subr.mxu0 0.0
    %386 = vmatpush1.msra.mxu0 0.0
    %387 = vmatprep.mubr.f32.mxu0 0.0
    %388 = vmatmul.mubr.f32.gmra.mrb[0].mxu0 %v306
    %v389 = vpop.f32.mrb[0].mxu0
    %v390 = vadd.f32 0.0, %v389
    %v391 = vpop.f32.mrb[0].mxu0
    %392 = vdwg.mxu0
    %v393 = vmax.f32 %v390, 0.0
    %v394 = vld [vmem:[#allocation10] sm:$0xff]
    %v395 = vld [vmem:[#allocation10 + $0x8] sm:$0xff]
    %v396 = vld [vmem:[#allocation10 + $0x10] sm:$0xff]
    %v397 = vld [vmem:[#allocation10 + $0x18] sm:$0xff]
    %v398 = vld [vmem:[#allocation10 + $0x20] sm:$0xff]
    %v399 = vld [vmem:[#allocation10 + $0x28] sm:$0xff]
    %v400 = vld [vmem:[#allocation10 + $0x30] sm:$0xff]
    %v401 = vld [vmem:[#allocation10 + $0x38] sm:$0xff]
    %v402 = vld [vmem:[#allocation10 + $0x40] sm:$0xff]
    %v403 = vld [vmem:[#allocation10 + $0x48] sm:$0xff]
    %v404 = vld [vmem:[#allocation10 + $0x50] sm:$0xff]
    %v405 = vld [vmem:[#allocation10 + $0x58] sm:$0xff]
    %v406 = vld [vmem:[#allocation10 + $0x60] sm:$0xff]
    %v407 = vld [vmem:[#allocation10 + $0x68] sm:$0xff]
    %v408 = vld [vmem:[#allocation10 + $0x70] sm:$0xff]
    %v409 = vld [vmem:[#allocation10 + $0x78] sm:$0xff]
    %410 = vmatprep.subr.mxu0 0.0
    %411 = vmatpush1.msra.mxu0 %v394
    %412 = vmatprep.subr.mxu0 0.0
    %413 = vmatpush1.msra.mxu0 %v395
    %414 = vmatprep.subr.mxu0 0.0
    %415 = vmatpush1.msra.mxu0 %v396
    %416 = vmatprep.subr.mxu0 0.0
    %417 = vmatpush1.msra.mxu0 %v397
    %418 = vmatprep.subr.mxu0 0.0
    %419 = vmatpush1.msra.mxu0 %v398
    %420 = vmatprep.subr.mxu0 0.0
    %421 = vmatpush1.msra.mxu0 %v399
    %422 = vmatprep.subr.mxu0 0.0
    %423 = vmatpush1.msra.mxu0 %v400
    %424 = vmatprep.subr.mxu0 0.0
    %425 = vmatpush1.msra.mxu0 %v401
    %426 = vmatprep.subr.mxu0 0.0
    %427 = vmatpush1.msra.mxu0 %v402
    %428 = vmatprep.subr.mxu0 0.0
    %429 = vmatpush1.msra.mxu0 %v403
    %430 = vmatprep.subr.mxu0 0.0
    %431 = vmatpush1.msra.mxu0 %v404
    %432 = vmatprep.subr.mxu0 0.0
    %433 = vmatpush1.msra.mxu0 %v405
    %434 = vmatprep.subr.mxu0 0.0
    %435 = vmatpush1.msra.mxu0 %v406
    %436 = vmatprep.subr.mxu0 0.0
    %437 = vmatpush1.msra.mxu0 %v407
    %438 = vmatprep.subr.mxu0 0.0
    %439 = vmatpush1.msra.mxu0 %v408
    %440 = vmatprep.subr.mxu0 0.0
    %441 = vmatpush1.msra.mxu0 %v409
    %442 = vmatprep.subr.mxu0 0.0
    %443 = vmatpush1.msra.mxu0 0.0
    %444 = vmatprep.subr.mxu0 0.0
    %445 = vmatpush1.msra.mxu0 0.0
    %446 = vmatprep.subr.mxu0 0.0
    %447 = vmatpush1.msra.mxu0 0.0
    %448 = vmatprep.subr.mxu0 0.0
    %449 = vmatpush1.msra.mxu0 0.0
    %450 = vmatprep.subr.mxu0 0.0
    %451 = vmatpush1.msra.mxu0 0.0
    %452 = vmatprep.subr.mxu0 0.0
    %453 = vmatpush1.msra.mxu0 0.0
    %454 = vmatprep.subr.mxu0 0.0
    %455 = vmatpush1.msra.mxu0 0.0
    %456 = vmatprep.subr.mxu0 0.0
    %457 = vmatpush1.msra.mxu0 0.0
    %458 = vmatprep.subr.mxu0 0.0
    %459 = vmatpush1.msra.mxu0 0.0
    %460 = vmatprep.subr.mxu0 0.0
    %461 = vmatpush1.msra.mxu0 0.0
    %462 = vmatprep.subr.mxu0 0.0
    %463 = vmatpush1.msra.mxu0 0.0
    %464 = vmatprep.subr.mxu0 0.0
    %465 = vmatpush1.msra.mxu0 0.0
    %466 = vmatprep.subr.mxu0 0.0
    %467 = vmatpush1.msra.mxu0 0.0
    %468 = vmatprep.subr.mxu0 0.0
    %469 = vmatpush1.msra.mxu0 0.0
    %470 = vmatprep.subr.mxu0 0.0
    %471 = vmatpush1.msra.mxu0 0.0
    %472 = vmatprep.subr.mxu0 0.0
    %473 = vmatpush1.msra.mxu0 0.0
    %474 = vmatprep.mubr.f32.mxu0 0.0
    %475 = vmatmul.mubr.f32.gmra.mrb[0].mxu0 %v393
    %v476 = vpop.f32.mrb[0].mxu0
    %v477 = vadd.f32 0.0, %v476
    %v478 = vpop.f32.mrb[0].mxu0
    %479 = vdwg.mxu0
    %480 = vst [vmem:[#allocation11] sm:$0xff] %v477
    // Predicated region
    $region42: #{tpu_custom_call.1} parent=1 // pred_check
      _
    $region43: #{tpu_custom_call.1} parent=1 // pred_check_branch
      %482 = sbr.rel (0) target = $region45
    $region44: #{tpu_custom_call.1} parent=1 // pred_region
      %s484 = ssub.s32 128, 32
      %485 = vsyncadd [#allocation4], %s484
      %s486 = sshll.u32 [#allocation11], 4
      %s487 = int_to_ptr.vmem [resolvable:$true] %s486
      %492 = dma.vmem_to_hbm [thread:$0]  %s487, 32, %s5, [#allocation4], 32, 32, 2
    $region45: #{tpu_custom_call.1} parent=1 // pred_fallthru
      _
    // Predicated region
    $region46: #{tpu_custom_call.1} parent=1 // pred_check
      _
    $region47: #{tpu_custom_call.1} parent=1 // pred_check_branch
      %494 = sbr.rel (0) target = $region49
    $region48: #{tpu_custom_call.1} parent=1 // pred_region
      %495 = dma.done [#allocation4], 128
    $region49: #{tpu_custom_call.1} parent=1 // pred_fallthru
      _
    %496 = vsyncpa [#allocation3], 1
    %497 = vsyncpa [#allocation6], 1
    %498 = vsyncpa [#allocation9], 1
    %499 = vsyncpa [#allocation4], 1

</llo_original>
